<compile_context>
chip_gen: v6e
topology: v6e:2x2x1
jax: 0.10.0
libtpu: 0.0.40
codegen_flags: <defaults>
</compile_context>

<pallas_src>
import functools

import jax
import jax.numpy as jnp
from jax.experimental import pallas as pl
from jax.experimental.pallas import tpu as pltpu


def _rmsnorm_kernel(x_ref, g_ref, o_ref, *, eps: float, inv_dim: float):
    # x_ref: (row_tile, dim), g_ref: (1, dim) f32, o_ref: (row_tile, dim).
    # One live full-tile f32 temp; 1/dim folded into the rsqrt argument so the
    # reduction is a plain XLU sum and the EUP rsqrt absorbs the scale.
    x = x_ref[...].astype(jnp.float32)
    ssq = jnp.sum(x * x, axis=-1, keepdims=True)           # (row_tile, 1) f32
    inv_rms = jax.lax.rsqrt(ssq * inv_dim + eps)            # EUP rsqrt
    o_ref[...] = (x * (inv_rms * g_ref[...])).astype(o_ref.dtype)


def _sublane_multiple(dtype) -> int:
    # f32 -> 8, bf16/f16 -> 16, int8/fp8 -> 32 (sub-32-bit dtypes pack sublanes)
    itemsize = jnp.dtype(dtype).itemsize
    return max(8, 32 // max(itemsize, 1))


def _round_up(n: int, m: int) -> int:
    return ((n + m - 1) // m) * m


def _cdiv(a: int, b: int) -> int:
    return (a + b - 1) // b


def _choose_row_tile(rows: int, dim: int, itemsize: int, sub: int,
                     requested: int | None) -> int:
    if requested is not None:
        rt = max(sub, _round_up(requested, sub))
        return max(sub, min(rt, _round_up(rows, sub)))
    # ~2 MiB per buffer: near the HBM roofline already, portable to v7x VMEM.
    per_buf_rows = max(1, (2 << 20) // (dim * itemsize))
    rt = max(sub, (per_buf_rows // sub) * sub)
    # Aim for >= ~8 grid steps so the pipeline has work to overlap, but keep
    # tiles at >= ~256 rows (DMA efficiency) and never below the sublane unit.
    rt_steps = _round_up(_cdiv(rows, 8), sub)
    rt_floor = _round_up(min(rows, 256), sub)
    rt = min(rt, max(rt_steps, min(rt_floor, rt)))
    rt = max(sub, min(rt, _round_up(rows, sub)))
    # Prefer an even step count so v7x's two TensorCores split the row axis
    # evenly (no effect on v5e/v6e single-TC chips).
    steps = _cdiv(rows, rt)
    if steps > 1 and steps % 2 == 1:
        cand = max(sub, _round_up(_cdiv(rows, steps + 1), sub))
        if _cdiv(rows, cand) % 2 == 0:
            rt = cand
    return rt


def rms_norm(x: jax.Array, g: jax.Array, eps: float = 1e-6,
             row_tile: int | None = None) -> jax.Array:
    """RMSNorm over the last axis of x with per-feature gain g (shape [dim])."""
    orig_shape = x.shape
    dim = orig_shape[-1]
    assert g.shape == (dim,)

    x2d = x.reshape(-1, dim)
    rows = x2d.shape[0]
    itemsize = jnp.dtype(x.dtype).itemsize
    sub = _sublane_multiple(x.dtype)

    # Lane-dense stores: pad the feature axis once only if dim is not a
    # multiple of 128 (DeepSeek-v3's 7168 is, so this is normally a no-op).
    # The mean uses the true dim (padded zero columns contribute 0 to ssq).
    dim_pad = _round_up(dim, 128)
    g2d = g.astype(jnp.float32).reshape(1, dim)              # pre-cast once
    if dim_pad != dim:
        x2d = jnp.pad(x2d, ((0, 0), (0, dim_pad - dim)))
        g2d = jnp.pad(g2d, ((0, 0), (0, dim_pad - dim)))

    rt = _choose_row_tile(rows, dim_pad, itemsize, sub, row_tile)
    grid = (_cdiv(rows, rt),)                                # ragged last block OK

    # Generation-aware scoped VMEM limit: double-buffered in+out tiles plus
    # the in-kernel f32 intermediates plus headroom, <= 3/4 of physical VMEM.
    io_bytes = 4 * rt * dim_pad * itemsize                   # 2 bufs each, in + out
    interm_bytes = 2 * rt * dim_pad * 4                      # f32 upcast / product
    try:
        vmem_cap = int(pltpu.get_tpu_info().vmem_capacity_bytes)
    except Exception:
        vmem_cap = 64 << 20                                  # conservative (v7x per-TC)
    vmem_limit = int(min(io_bytes + interm_bytes + (8 << 20), (vmem_cap * 3) // 4))
    vmem_limit = max(vmem_limit, 16 << 20)

    cost = pl.CostEstimate(
        flops=3 * rows * dim_pad,
        transcendentals=rows,
        bytes_accessed=2 * rows * dim_pad * itemsize + dim_pad * 4,
    )

    out = pl.pallas_call(
        functools.partial(_rmsnorm_kernel, eps=eps, inv_dim=1.0 / dim),
        out_shape=jax.ShapeDtypeStruct((rows, dim_pad), x.dtype),
        grid_spec=pltpu.PrefetchScalarGridSpec(
            num_scalar_prefetch=0,
            grid=grid,
            in_specs=[
                pl.BlockSpec((rt, dim_pad), lambda i: (i, 0)),
                pl.BlockSpec((1, dim_pad), lambda i: (0, 0)),  # g stays resident
            ],
            out_specs=pl.BlockSpec((rt, dim_pad), lambda i: (i, 0)),
        ),
        compiler_params=pltpu.CompilerParams(
            dimension_semantics=("parallel",),   # row axis splits across v7x TCs
            vmem_limit_bytes=vmem_limit,
        ),
        cost_estimate=cost,
    )(x2d, g2d)

    if dim_pad != dim:
        out = out[:, :dim]
    return out.reshape(orig_shape)


def rms_norm_ref(x, g, eps=1e-6):
    rms = jnp.sqrt(jnp.mean(x.astype(jnp.float32) ** 2, axis=-1, keepdims=True) + eps)
    return (x.astype(jnp.float32) * g[None, :].astype(jnp.float32) / rms).astype(x.dtype)


if __name__ == "__main__":
    key = jax.random.PRNGKey(0)

    # Small but lane-dense demo shape (dim multiple of 128 -> unmasked stores).
    batch, seq, dim = 2, 8, 256
    x = jax.random.normal(key, (batch, seq, dim), dtype=jnp.float32)
    # Deterministic parameter init: the module initializes g = ones(dim).
    g = jnp.ones((dim,), dtype=jnp.float32)

    out = rms_norm(x, g, eps=1e-6)
    jax.block_until_ready(out)
    ref = rms_norm_ref(x, g, eps=1e-6)
    assert out.shape == x.shape
    assert jnp.allclose(out, ref, atol=1e-5, rtol=1e-5), "f32 mismatch vs reference"

    # bf16 input with a non-tile-divisible row count exercises the ragged
    # last-block path (no wrapper-side padding) and sublane-aligned tiling.
    x_bf16 = jax.random.normal(jax.random.PRNGKey(1), (3, 5, dim), dtype=jnp.bfloat16)
    out_bf16 = rms_norm(x_bf16, g, eps=1e-6)
    jax.block_until_ready(out_bf16)
    ref_bf16 = rms_norm_ref(x_bf16, g, eps=1e-6)
    assert out_bf16.shape == x_bf16.shape
    assert jnp.allclose(out_bf16.astype(jnp.float32), ref_bf16.astype(jnp.float32),
                        atol=2e-2, rtol=2e-2), "bf16 mismatch vs reference"

    # Larger f32 case with many rows exercises the multi-step (even) grid and
    # the 2 MiB tile cap / >=8-step pipeline policy.
    x_big = jax.random.normal(jax.random.PRNGKey(2), (36, 130, dim), dtype=jnp.float32)
    out_big = rms_norm(x_big, g, eps=1e-6)
    jax.block_until_ready(out_big)
    ref_big = rms_norm_ref(x_big, g, eps=1e-6)
    assert jnp.allclose(out_big, ref_big, atol=1e-5, rtol=1e-5), "big-case mismatch"

    print("KERNEL_OK")
</pallas_src>

<mosaic_0001>
module attributes {stable_mosaic.version = 11 : i64} {
  func.func @_rmsnorm_kernel(%arg0: i32, %arg1: memref<16x256xf32, #tpu.memory_space<vmem>>, %arg2: memref<1x256xf32, #tpu.memory_space<vmem>>, %arg3: memref<16x256xf32, #tpu.memory_space<vmem>>) attributes {dimension_semantics = [#tpu.dimension_semantics<parallel>], iteration_bounds = array<i64: 1>, scalar_prefetch = 0 : i64, scratch_operands = 0 : i64, tpu.core_type = #tpu.core_type<tc>, window_params = [{transform_indices = @transform_0, window_bounds = array<i64: 16, 256>}, {pipeline_mode = #tpu.pipeline_mode<synchronous>, transform_indices = @transform_1, window_bounds = array<i64: 1, 256>}, {transform_indices = @transform_2, window_bounds = array<i64: 16, 256>}]} {
    %c0 = arith.constant 0 : index
    %c0_0 = arith.constant 0 : index
    %0 = vector.load %arg1[%c0, %c0_0] : memref<16x256xf32, #tpu.memory_space<vmem>>, vector<16x256xf32>
    %1 = arith.mulf %0, %0 : vector<16x256xf32>
    %cst = arith.constant dense<0.000000e+00> : vector<16xf32>
    %2 = vector.multi_reduction <add>, %1, %cst [1] : vector<16x256xf32> to vector<16xf32>
    %3 = vector.shape_cast %2 : vector<16xf32> to vector<16x1xf32>
    %cst_1 = arith.constant 3.906250e-03 : f32
    %4 = vector.broadcast %cst_1 : f32 to vector<16x1xf32>
    %5 = arith.mulf %3, %4 : vector<16x1xf32>
    %cst_2 = arith.constant 9.99999997E-7 : f32
    %6 = vector.broadcast %cst_2 : f32 to vector<16x1xf32>
    %7 = arith.addf %5, %6 : vector<16x1xf32>
    %8 = math.rsqrt %7 : vector<16x1xf32>
    %c0_3 = arith.constant 0 : index
    %c0_4 = arith.constant 0 : index
    %9 = vector.load %arg2[%c0_3, %c0_4] : memref<1x256xf32, #tpu.memory_space<vmem>>, vector<1x256xf32>
    %10 = vector.broadcast %8 : vector<16x1xf32> to vector<16x256xf32>
    %11 = vector.broadcast %9 : vector<1x256xf32> to vector<16x256xf32>
    %12 = arith.mulf %10, %11 : vector<16x256xf32>
    %13 = arith.mulf %0, %12 : vector<16x256xf32>
    %c0_5 = arith.constant 0 : index
    %c0_6 = arith.constant 0 : index
    %14 = vector.load %arg3[%c0_5, %c0_6] : memref<16x256xf32, #tpu.memory_space<vmem>>, vector<16x256xf32>
    tpu.vector_store %arg3[%c0_5, %c0_6], %13 {strides = array<i32>} : memref<16x256xf32, #tpu.memory_space<vmem>>, vector<16x256xf32>,
    return
  }
  func.func @transform_0(%arg0: i32) -> (i32, i32) {
    %c0_i32 = arith.constant 0 : i32
    %c0_i32_0 = arith.constant 0 : i32
    return %arg0, %c0_i32 : i32, i32
  }
  func.func @transform_1(%arg0: i32) -> (i32, i32) {
    %c0_i32 = arith.constant 0 : i32
    %c0_i32_0 = arith.constant 0 : i32
    %c0_i32_1 = arith.constant 0 : i32
    return %c0_i32, %c0_i32_0 : i32, i32
  }
  func.func @transform_2(%arg0: i32) -> (i32, i32) {
    %c0_i32 = arith.constant 0 : i32
    %c0_i32_0 = arith.constant 0 : i32
    return %arg0, %c0_i32 : i32, i32
  }
}

</mosaic_0001>

<llo_original>
// kernel: tpu_custom_call.1
$region0: #{tpu_custom_call.1}
  #allocation0 [shape = 'u32[]', space=smem, size = 0x4, offset = 0x4, fixed_abs, tag = 'smem constant byte address 0x4 - core index']
  #allocation1 [shape = 'u32[144,128]{1,0:T(1,128)}', space=vmem, size = 0x12000, scoped, tag = 'internal scratch']
  %s0 = inlined_call_operand.hbm [shape: f32[16,256], index: 0, kind: input, shape index: {}]
  %s1 = inlined_call_operand.hbm [shape: f32[1,256], index: 1, kind: input, shape index: {}]
  %s2 = inlined_call_operand.hbm [shape: f32[16,256], index: 2, kind: output, shape index: {}]
  %s3 = sld [smem:[#allocation0]]
  $region26: #{tpu_custom_call.1} parent=0
    _
  %s5 = ssub.s32 1, %s3
  %s6 = scalar_select 0, %s5, %s3
  $region1: #{tpu_custom_call.1} parent=0
    #allocation2 [shape = 'u8[16384]{0}', space=vmem, size = 0x4000, scoped, tag = 'input window, operand 0, single buffered']
    #allocation3 [shape = 's32[1]{0}', space=sflag, size = 0x4, scoped, tag = 'scoped memory for tpu_custom_call.1']
    #allocation4 [shape = 's32[1]{0}', space=sflag, size = 0x4, scoped, tag = 'scoped memory for tpu_custom_call.1']
    #allocation5 [shape = 'u8[1024]{0}', space=vmem, size = 0x400, scoped, tag = 'input window, operand 1, single buffered']
    #allocation6 [shape = 's32[1]{0}', space=sflag, size = 0x4, scoped, tag = 'scoped memory for tpu_custom_call.1']
    #allocation7 [shape = 'u8[16384]{0}', space=vmem, size = 0x4000, scoped, tag = 'output window, operand 0, single buffered']
    %7 = vsyncpa [#allocation3], 0
    %8 = vsyncpa [#allocation6], 0
    %9 = vsyncpa [#allocation4], 0
    // Predicated region
    $region2: #{tpu_custom_call.1} parent=1 // pred_check
      _
    $region3: #{tpu_custom_call.1} parent=1 // pred_check_branch
      %11 = sbr.rel (0) target = $region5
    $region4: #{tpu_custom_call.1} parent=1 // pred_region
      %s13 = ssub.s32 512, 512
      %14 = vsyncadd [#allocation3], %s13
      %s15 = sshll.u32 [#allocation2], 4
      %s16 = int_to_ptr.vmem [resolvable:$true] %s15
      %21 = dma.hbm_to_vmem [thread:$0]  %s0, 512, %s16, [#allocation3], 256, 256, 16
    $region5: #{tpu_custom_call.1} parent=1 // pred_fallthru
      _
    // Predicated region
    $region6: #{tpu_custom_call.1} parent=1 // pred_check
      _
    $region7: #{tpu_custom_call.1} parent=1 // pred_check_branch
      %23 = sbr.rel (0) target = $region9
    $region8: #{tpu_custom_call.1} parent=1 // pred_region
      %s25 = ssub.s32 32, 32
      %26 = vsyncadd [#allocation6], %s25
      %s28 = sshll.u32 [#allocation5], 4
      %s29 = int_to_ptr.vmem [resolvable:$true] %s28
      %31 = dma.hbm_to_vmem [thread:$0]  %s1, 32, %s29, [#allocation6]
    $region9: #{tpu_custom_call.1} parent=1 // pred_fallthru
      _
    // Predicated region
    $region10: #{tpu_custom_call.1} parent=1 // pred_check
      _
    $region11: #{tpu_custom_call.1} parent=1 // pred_check_branch
      %33 = sbr.rel (0) target = $region13
    $region12: #{tpu_custom_call.1} parent=1 // pred_region
      %34 = dma.done [#allocation3], 512
    $region13: #{tpu_custom_call.1} parent=1 // pred_fallthru
      _
    // Predicated region
    $region14: #{tpu_custom_call.1} parent=1 // pred_check
      _
    $region15: #{tpu_custom_call.1} parent=1 // pred_check_branch
      %36 = sbr.rel (0) target = $region17
    $region16: #{tpu_custom_call.1} parent=1 // pred_region
      %37 = dma.done [#allocation6], 32
    $region17: #{tpu_custom_call.1} parent=1 // pred_fallthru
      _
    %v38 = vld [vmem:[#allocation2] sm:$0xff]
    %v39 = vld [vmem:[#allocation2 + $0x8] sm:$0xff]
    %v40 = vld [vmem:[#allocation2 + $0x10] sm:$0xff]
    %v41 = vld [vmem:[#allocation2 + $0x18] sm:$0xff]
    %v42 = vmul.f32 %v38, %v38
    %v43 = vmul.f32 %v39, %v39
    %v44 = vmul.f32 %v40, %v40
    %v45 = vmul.f32 %v41, %v41
    %v46 = vadd.f32 %v42, %v43
    %47 = vadd.xlane.f32.xlu0 %v46
    %v48 = vpop.xlane.xlu0 %47
    %v49 = vadd.f32 %v44, %v45
    %50 = vadd.xlane.f32.xlu0 %v49
    %v51 = vpop.xlane.xlu0 %50
    %v52 = vmul.f32 %v48, 0.00390625
    %v53 = vmul.f32 %v51, 0.00390625
    %v54 = vadd.f32 %v52, 1e-06
    %v55 = vadd.f32 %v53, 1e-06
    %v56 = vrsqrt.pop %v54
    %v57 = vrsqrt.pop %v55
    %v58 = vld [vmem:[#allocation5] sm:$0x3]
    %v60 = vlaneseq
    %v61 = vshrl.u32 %v60, 7
    %v62 = vsub.s32 0, %v61
    %v63 = vrot.slane %v58, %v62
    %v64 = vlaneseq
    %v65 = vshrl.u32 %v64, 7
    %v66 = vsub.s32 1, %v65
    %v67 = vrot.slane %v58, %v66
    %v70 = vmul.f32 %v56, %v63
    %v71 = vmul.f32 %v56, %v67
    %v72 = vmul.f32 %v57, %v63
    %v73 = vmul.f32 %v57, %v67
    %v74 = vmul.f32 %v38, %v70
    %v75 = vmul.f32 %v39, %v71
    %v76 = vmul.f32 %v40, %v72
    %v77 = vmul.f32 %v41, %v73
    %78 = vst [vmem:[#allocation7] sm:$0xff] %v74
    %79 = vst [vmem:[#allocation7 + $0x8] sm:$0xff] %v75
    %80 = vst [vmem:[#allocation7 + $0x10] sm:$0xff] %v76
    %81 = vst [vmem:[#allocation7 + $0x18] sm:$0xff] %v77
    // Predicated region
    $region18: #{tpu_custom_call.1} parent=1 // pred_check
      _
    $region19: #{tpu_custom_call.1} parent=1 // pred_check_branch
      %83 = sbr.rel (0) target = $region21
    $region20: #{tpu_custom_call.1} parent=1 // pred_region
      %s85 = ssub.s32 512, 512
      %86 = vsyncadd [#allocation4], %s85
      %s87 = sshll.u32 [#allocation7], 4
      %s88 = int_to_ptr.vmem [resolvable:$true] %s87
      %93 = dma.vmem_to_hbm [thread:$0]  %s88, 512, %s2, [#allocation4], 256, 256, 16
    $region21: #{tpu_custom_call.1} parent=1 // pred_fallthru
      _
    // Predicated region
    $region22: #{tpu_custom_call.1} parent=1 // pred_check
      _
    $region23: #{tpu_custom_call.1} parent=1 // pred_check_branch
      %95 = sbr.rel (0) target = $region25
    $region24: #{tpu_custom_call.1} parent=1 // pred_region
      %96 = dma.done [#allocation4], 512
    $region25: #{tpu_custom_call.1} parent=1 // pred_fallthru
      _
    %97 = vsyncpa [#allocation3], 1
    %98 = vsyncpa [#allocation6], 1
    %99 = vsyncpa [#allocation4], 1

</llo_original>
